<compile_context>
chip_gen: v7x
topology: tpu7x:2x2x1
jax: 0.10.0
libtpu: 0.0.40
codegen_flags: <defaults>
</compile_context>

<pallas_src>
import jax
import jax.numpy as jnp
from jax import lax
from jax.experimental import pallas as pl
from jax.experimental.pallas import tpu as pltpu


def _rup(x, m):
    return ((x + m - 1) // m) * m


# ---------------------------------------------------------------------------
# Kernel
# ---------------------------------------------------------------------------
def _manager_kernel(xh_ref, h_ref, wcat_ref, b_ref, wfc_ref, bfc_ref,
                    g_ref, hout_ref):
    Hp = h_ref.shape[-1]
    h = h_ref[...]                                   # [TM, Hp] f32

    # One fused MXU pass over K = F + H (bf16 operands, f32 accumulation),
    # writing straight into the lane-aligned gate layout [r | z | i_n | h_n].
    gates = jnp.dot(xh_ref[...], wcat_ref[...],
                    preferred_element_type=jnp.float32) + b_ref[...]   # [TM, 4*Hp]

    r = jax.nn.sigmoid(gates[:, 0 * Hp:1 * Hp])
    z = jax.nn.sigmoid(gates[:, 1 * Hp:2 * Hp])
    n = jnp.tanh(gates[:, 2 * Hp:3 * Hp] + r * gates[:, 3 * Hp:4 * Hp])
    h_new = (1.0 - z) * n + z * h                    # padded H columns stay exactly 0
    hout_ref[...] = h_new.astype(hout_ref.dtype)

    # fc: g_raw = h_new @ W_fc^T + b_fc  (bf16 operands; padded G columns exactly 0)
    g_raw = jnp.dot(h_new.astype(wfc_ref.dtype), wfc_ref[...],
                    preferred_element_type=jnp.float32) + bfc_ref[...]  # [TM, Gp]

    # F.normalize(p=2, dim=-1): x / max(||x||, 1e-12) == x * rsqrt(max(||x||^2, 1e-24))
    sum_sq = jnp.sum(g_raw * g_raw, axis=-1, keepdims=True)
    g_ref[...] = (g_raw * lax.rsqrt(jnp.maximum(sum_sq, 1e-24))).astype(g_ref.dtype)


# ---------------------------------------------------------------------------
# Parameter handling
# ---------------------------------------------------------------------------
def init_manager_params(key, feature_dim, goal_dim, hidden_dim):
    """Raw PyTorch-layout parameters (uniform init, PyTorch's default scale)."""
    ks = jax.random.split(key, 6)
    k = 1.0 / (hidden_dim ** 0.5)
    u = lambda kk, shape: jax.random.uniform(kk, shape, jnp.float32, -k, k)
    return {
        "w_ih": u(ks[0], (3 * hidden_dim, feature_dim)),   # gate order (r, z, n)
        "w_hh": u(ks[1], (3 * hidden_dim, hidden_dim)),
        "b_ih": u(ks[2], (3 * hidden_dim,)),
        "b_hh": u(ks[3], (3 * hidden_dim,)),
        "w_fc": u(ks[4], (goal_dim, hidden_dim)),
        "b_fc": u(ks[5], (goal_dim,)),
    }


def pack_manager_params(raw, feature_dim, goal_dim, hidden_dim):
    """Repack raw params into the fused, lane-aligned, bf16 kernel layout (once)."""
    F, H, G = feature_dim, hidden_dim, goal_dim
    Hp, Gp = _rup(H, 128), _rup(G, 128)
    K = F + H

    w_ir, w_iz, w_in = raw["w_ih"][0:H], raw["w_ih"][H:2 * H], raw["w_ih"][2 * H:]
    w_hr, w_hz, w_hn = raw["w_hh"][0:H], raw["w_hh"][H:2 * H], raw["w_hh"][2 * H:]
    b_ir, b_iz, b_in = raw["b_ih"][0:H], raw["b_ih"][H:2 * H], raw["b_ih"][2 * H:]
    b_hr, b_hz, b_hn = raw["b_hh"][0:H], raw["b_hh"][H:2 * H], raw["b_hh"][2 * H:]

    # Fused gate weight: rows [0:F] multiply x, rows [F:F+H] multiply h;
    # columns are the gate blocks [r | z | i_n | h_n], each padded to Hp lanes.
    w_cat = jnp.zeros((K, 4 * Hp), jnp.float32)
    w_cat = w_cat.at[:F, 0 * Hp:0 * Hp + H].set(w_ir.T)
    w_cat = w_cat.at[:F, 1 * Hp:1 * Hp + H].set(w_iz.T)
    w_cat = w_cat.at[:F, 2 * Hp:2 * Hp + H].set(w_in.T)
    w_cat = w_cat.at[F:, 0 * Hp:0 * Hp + H].set(w_hr.T)
    w_cat = w_cat.at[F:, 1 * Hp:1 * Hp + H].set(w_hz.T)
    w_cat = w_cat.at[F:, 3 * Hp:3 * Hp + H].set(w_hn.T)

    # Single fused bias row: r/z input+hidden biases pre-combined, n-gate biases split.
    b = jnp.zeros((1, 4 * Hp), jnp.float32)
    b = b.at[0, 0 * Hp:0 * Hp + H].set(b_ir + b_hr)
    b = b.at[0, 1 * Hp:1 * Hp + H].set(b_iz + b_hz)
    b = b.at[0, 2 * Hp:2 * Hp + H].set(b_in)
    b = b.at[0, 3 * Hp:3 * Hp + H].set(b_hn)

    w_fc = jnp.zeros((Hp, Gp), jnp.float32).at[:H, :G].set(raw["w_fc"].T)
    b_fc = jnp.zeros((1, Gp), jnp.float32).at[0, :G].set(raw["b_fc"])

    return {
        "w_cat": w_cat.astype(jnp.bfloat16),   # bf16 MXU operand
        "b": b,                                 # f32 (added after f32 accumulation)
        "w_fc": w_fc.astype(jnp.bfloat16),
        "b_fc": b_fc,
        "dims": (F, H, G),
    }


# ---------------------------------------------------------------------------
# Wrapper
# ---------------------------------------------------------------------------
def manager_forward(features, hidden_state, packed):
    """features: [B, N, F]; hidden_state: [1, B*N, H]  ->  (g [B,N,G], h' [1,B*N,H])."""
    F, H, G = packed["dims"]
    B, N, _ = features.shape
    M = B * N
    Hp, Gp = _rup(H, 128), _rup(G, 128)
    K = F + H

    x2d = features.reshape(M, F).astype(jnp.float32)
    h2d = hidden_state.reshape(M, H).astype(jnp.float32)

    # Fused bf16 MXU operand [x | h]; no row padding (partial last tile handled by
    # the cdiv grid) and no column padding needed on the contraction dim.
    xh = jnp.concatenate([x2d, h2d], axis=-1).astype(jnp.bfloat16)

    # f32 hidden state for the (1-z)*n + z*h recombine; pad columns only when
    # H is not already lane-aligned.
    h_in = h2d if H == Hp else jnp.zeros((M, Hp), jnp.float32).at[:, :H].set(h2d)

    # Row tile: >= 2 grid steps whenever M allows it (v7x has 2 TCs), capped at 256.
    TM = max(8, min(256, _rup((M + 1) // 2, 8)))
    grid = (pl.cdiv(M, TM),)

    row = lambda c: pl.BlockSpec((TM, c), lambda i: (i, 0))    # tiled over rows
    rep = lambda r, c: pl.BlockSpec((r, c), lambda i: (0, 0))  # grid-invariant weights

    # Explicit scoped-VMEM budget from the actual working set (v5e default is 16 MiB).
    blk_in = TM * K * 2 + TM * Hp * 4
    blk_w = K * 4 * Hp * 2 + 4 * Hp * 4 + Hp * Gp * 2 + Gp * 4
    blk_out = TM * (Gp + Hp) * 4
    live = TM * (4 * Hp + 4 * Hp + Gp) * 4            # gates + r/z/n/h_new + g_raw
    working = 2 * (blk_in + blk_w + blk_out) + live   # 2x = default double-buffering
    vmem_limit = int(min(64 << 20, max(16 << 20, 2 * working + (4 << 20))))

    g_pad, h_pad = pl.pallas_call(
        _manager_kernel,
        out_shape=(
            jax.ShapeDtypeStruct((M, Gp), jnp.float32),
            jax.ShapeDtypeStruct((M, Hp), jnp.float32),
        ),
        grid=grid,
        in_specs=[
            row(K),              # [x | h]     bf16
            row(Hp),             # h0          f32 (aliased to h_new output)
            rep(K, 4 * Hp),      # W_cat       bf16, gate blocks [r|z|i_n|h_n]
            rep(1, 4 * Hp),      # fused bias  f32
            rep(Hp, Gp),         # W_fc^T      bf16
            rep(1, Gp),          # b_fc        f32
        ],
        out_specs=(
            row(Gp),             # g
            row(Hp),             # h_new
        ),
        input_output_aliases={1: 1},   # reuse the hidden-state HBM buffer
        compiler_params=pltpu.CompilerParams(
            dimension_semantics=("parallel",),
            vmem_limit_bytes=vmem_limit),
    )(xh, h_in, packed["w_cat"], packed["b"], packed["w_fc"], packed["b_fc"])

    g = (g_pad if G == Gp else g_pad[:, :G]).reshape(B, N, G)
    h_out = (h_pad if H == Hp else h_pad[:, :H]).reshape(1, M, H)
    return g, h_out


# ---------------------------------------------------------------------------
# Pure-JAX reference (mirrors the PyTorch forward exactly, f32)
# ---------------------------------------------------------------------------
def manager_reference(features, hidden_state, raw):
    B, N, F = features.shape
    H = raw["w_hh"].shape[1]
    x = features.reshape(B * N, F)
    h = hidden_state.reshape(B * N, H)
    gi = x @ raw["w_ih"].T + raw["b_ih"]
    gh = h @ raw["w_hh"].T + raw["b_hh"]
    i_r, i_z, i_n = jnp.split(gi, 3, axis=-1)
    h_r, h_z, h_n = jnp.split(gh, 3, axis=-1)
    r = jax.nn.sigmoid(i_r + h_r)
    z = jax.nn.sigmoid(i_z + h_z)
    n = jnp.tanh(i_n + r * h_n)
    h_new = (1.0 - z) * n + z * h
    g_raw = h_new @ raw["w_fc"].T + raw["b_fc"]
    norm = jnp.maximum(jnp.linalg.norm(g_raw, axis=-1, keepdims=True), 1e-12)
    g = (g_raw / norm).reshape(B, N, -1)
    return g, h_new.reshape(1, B * N, H)


if __name__ == "__main__":
    B, N = 2, 4               # batch, n_agents
    FEATURE_DIM = 16
    HIDDEN_DIM = 32
    GOAL_DIM = 8

    key = jax.random.PRNGKey(0)
    k_feat, k_hid, k_par = jax.random.split(key, 3)

    features = jax.random.normal(k_feat, (B, N, FEATURE_DIM), jnp.float32)
    hidden_state = jax.random.normal(k_hid, (1, B * N, HIDDEN_DIM), jnp.float32)

    raw_params = init_manager_params(k_par, FEATURE_DIM, GOAL_DIM, HIDDEN_DIM)
    packed_params = pack_manager_params(raw_params, FEATURE_DIM, GOAL_DIM, HIDDEN_DIM)

    g, h_new = manager_forward(features, hidden_state, packed_params)
    jax.block_until_ready((g, h_new))

    g_ref, h_ref = manager_reference(features, hidden_state, raw_params)
    assert g.shape == (B, N, GOAL_DIM)
    assert h_new.shape == (1, B * N, HIDDEN_DIM)
    # bf16 MXU operands -> relaxed tolerance vs the f32 reference.
    assert jnp.allclose(g, g_ref, atol=5e-2), "goal mismatch vs reference"
    assert jnp.allclose(h_new, h_ref, atol=5e-2), "hidden mismatch vs reference"
    # Exact structural property (independent of bf16 rounding): g is unit-norm.
    assert jnp.allclose(jnp.linalg.norm(g, axis=-1), 1.0, atol=1e-3), "g not L2-normalized"

    print("KERNEL_OK")
</pallas_src>

<mosaic_0001>
module attributes {stable_mosaic.version = 11 : i64} {
  func.func @_manager_kernel(%arg0: i32, %arg1: memref<8x48xbf16, #tpu.memory_space<vmem>>, %arg2: memref<8x128xf32, #tpu.memory_space<vmem>>, %arg3: memref<48x512xbf16, #tpu.memory_space<vmem>>, %arg4: memref<1x512xf32, #tpu.memory_space<vmem>>, %arg5: memref<128x128xbf16, #tpu.memory_space<vmem>>, %arg6: memref<1x128xf32, #tpu.memory_space<vmem>>, %arg7: memref<8x128xf32, #tpu.memory_space<vmem>>, %arg8: memref<8x128xf32, #tpu.memory_space<vmem>>) attributes {dimension_semantics = [#tpu.dimension_semantics<parallel>], iteration_bounds = array<i64: 1>, scalar_prefetch = 0 : i64, scratch_operands = 0 : i64, tpu.core_type = #tpu.core_type<tc>, window_params = [{transform_indices = @transform_0, window_bounds = array<i64: 8, 48>}, {transform_indices = @transform_1, window_bounds = array<i64: 8, 128>}, {pipeline_mode = #tpu.pipeline_mode<synchronous>, transform_indices = @transform_2, window_bounds = array<i64: 48, 512>}, {pipeline_mode = #tpu.pipeline_mode<synchronous>, transform_indices = @transform_3, window_bounds = array<i64: 1, 512>}, {pipeline_mode = #tpu.pipeline_mode<synchronous>, transform_indices = @transform_4, window_bounds = array<i64: 128, 128>}, {pipeline_mode = #tpu.pipeline_mode<synchronous>, transform_indices = @transform_5, window_bounds = array<i64: 1, 128>}, {transform_indices = @transform_6, window_bounds = array<i64: 8, 128>}, {transform_indices = @transform_7, window_bounds = array<i64: 8, 128>}]} {
    %c0 = arith.constant 0 : index
    %c0_0 = arith.constant 0 : index
    %0 = vector.load %arg2[%c0, %c0_0] : memref<8x128xf32, #tpu.memory_space<vmem>>, vector<8x128xf32>
    %c0_1 = arith.constant 0 : index
    %c0_2 = arith.constant 0 : index
    %1 = vector.load %arg1[%c0_1, %c0_2] : memref<8x48xbf16, #tpu.memory_space<vmem>>, vector<8x48xbf16>
    %c0_3 = arith.constant 0 : index
    %c0_4 = arith.constant 0 : index
    %2 = vector.load %arg3[%c0_3, %c0_4] : memref<48x512xbf16, #tpu.memory_space<vmem>>, vector<48x512xbf16>
    %cst = arith.constant dense<0.000000e+00> : vector<8x512xf32>
    %3 = tpu.matmul %1, %2, %cst {dimension_numbers = #tpu.dot_dimension_numbers<[1], [0], [0], [1], [0, 0, 1, 1], [], []>} : vector<8x48xbf16>, vector<48x512xbf16>, vector<8x512xf32> -> vector<8x512xf32>
    %c0_5 = arith.constant 0 : index
    %c0_6 = arith.constant 0 : index
    %4 = vector.load %arg4[%c0_5, %c0_6] : memref<1x512xf32, #tpu.memory_space<vmem>>, vector<1x512xf32>
    %5 = vector.broadcast %4 : vector<1x512xf32> to vector<8x512xf32>
    %6 = arith.addf %3, %5 : vector<8x512xf32>
    %7 = vector.extract_strided_slice %6 {offsets = [0, 0], sizes = [8, 128], strides = [1, 1]} : vector<8x512xf32> to vector<8x128xf32>
    %8 = arith.negf %7 : vector<8x128xf32>
    %9 = math.exp %8 : vector<8x128xf32>
    %cst_7 = arith.constant 1.000000e+00 : f32
    %10 = vector.broadcast %cst_7 : f32 to vector<8x128xf32>
    %11 = arith.addf %10, %9 : vector<8x128xf32>
    %12 = arith.divf %10, %11 : vector<8x128xf32>
    %13 = vector.extract_strided_slice %6 {offsets = [0, 128], sizes = [8, 128], strides = [1, 1]} : vector<8x512xf32> to vector<8x128xf32>
    %14 = arith.negf %13 : vector<8x128xf32>
    %15 = math.exp %14 : vector<8x128xf32>
    %cst_8 = arith.constant 1.000000e+00 : f32
    %16 = vector.broadcast %cst_8 : f32 to vector<8x128xf32>
    %17 = arith.addf %16, %15 : vector<8x128xf32>
    %18 = arith.divf %16, %17 : vector<8x128xf32>
    %19 = vector.extract_strided_slice %6 {offsets = [0, 256], sizes = [8, 128], strides = [1, 1]} : vector<8x512xf32> to vector<8x128xf32>
    %20 = vector.extract_strided_slice %6 {offsets = [0, 384], sizes = [8, 128], strides = [1, 1]} : vector<8x512xf32> to vector<8x128xf32>
    %21 = arith.mulf %12, %20 : vector<8x128xf32>
    %22 = arith.addf %19, %21 : vector<8x128xf32>
    %23 = math.tanh %22 : vector<8x128xf32>
    %cst_9 = arith.constant 1.000000e+00 : f32
    %24 = vector.broadcast %cst_9 : f32 to vector<8x128xf32>
    %25 = arith.subf %24, %18 : vector<8x128xf32>
    %26 = arith.mulf %25, %23 : vector<8x128xf32>
    %27 = arith.mulf %18, %0 : vector<8x128xf32>
    %28 = arith.addf %26, %27 : vector<8x128xf32>
    %c0_10 = arith.constant 0 : index
    %c0_11 = arith.constant 0 : index
    %29 = vector.load %arg8[%c0_10, %c0_11] : memref<8x128xf32, #tpu.memory_space<vmem>>, vector<8x128xf32>
    tpu.vector_store %arg8[%c0_10, %c0_11], %28 {strides = array<i32>} : memref<8x128xf32, #tpu.memory_space<vmem>>, vector<8x128xf32>,
    %30 = arith.truncf %28 : vector<8x128xf32> to vector<8x128xbf16>
    %c0_12 = arith.constant 0 : index
    %c0_13 = arith.constant 0 : index
    %31 = vector.load %arg5[%c0_12, %c0_13] : memref<128x128xbf16, #tpu.memory_space<vmem>>, vector<128x128xbf16>
    %cst_14 = arith.constant dense<0.000000e+00> : vector<8x128xf32>
    %32 = tpu.matmul %30, %31, %cst_14 {dimension_numbers = #tpu.dot_dimension_numbers<[1], [0], [0], [1], [0, 0, 1, 1], [], []>} : vector<8x128xbf16>, vector<128x128xbf16>, vector<8x128xf32> -> vector<8x128xf32>
    %c0_15 = arith.constant 0 : index
    %c0_16 = arith.constant 0 : index
    %33 = vector.load %arg6[%c0_15, %c0_16] : memref<1x128xf32, #tpu.memory_space<vmem>>, vector<1x128xf32>
    %34 = vector.broadcast %33 : vector<1x128xf32> to vector<8x128xf32>
    %35 = arith.addf %32, %34 : vector<8x128xf32>
    %36 = arith.mulf %35, %35 : vector<8x128xf32>
    %cst_17 = arith.constant dense<0.000000e+00> : vector<8xf32>
    %37 = vector.multi_reduction <add>, %36, %cst_17 [1] : vector<8x128xf32> to vector<8xf32>
    %38 = vector.shape_cast %37 : vector<8xf32> to vector<8x1xf32>
    %cst_18 = arith.constant 1.000000e-24 : f32
    %39 = vector.broadcast %cst_18 : f32 to vector<8x1xf32>
    %40 = arith.maximumf %38, %39 : vector<8x1xf32>
    %41 = math.rsqrt %40 : vector<8x1xf32>
    %42 = vector.broadcast %41 : vector<8x1xf32> to vector<8x128xf32>
    %43 = arith.mulf %35, %42 : vector<8x128xf32>
    %c0_19 = arith.constant 0 : index
    %c0_20 = arith.constant 0 : index
    %44 = vector.load %arg7[%c0_19, %c0_20] : memref<8x128xf32, #tpu.memory_space<vmem>>, vector<8x128xf32>
    tpu.vector_store %arg7[%c0_19, %c0_20], %43 {strides = array<i32>} : memref<8x128xf32, #tpu.memory_space<vmem>>, vector<8x128xf32>,
    return
  }
  func.func @transform_0(%arg0: i32) -> (i32, i32) {
    %c0_i32 = arith.constant 0 : i32
    %c0_i32_0 = arith.constant 0 : i32
    return %arg0, %c0_i32 : i32, i32
  }
  func.func @transform_1(%arg0: i32) -> (i32, i32) {
    %c0_i32 = arith.constant 0 : i32
    %c0_i32_0 = arith.constant 0 : i32
    return %arg0, %c0_i32 : i32, i32
  }
  func.func @transform_2(%arg0: i32) -> (i32, i32) {
    %c0_i32 = arith.constant 0 : i32
    %c0_i32_0 = arith.constant 0 : i32
    %c0_i32_1 = arith.constant 0 : i32
    return %c0_i32, %c0_i32_0 : i32, i32
  }
  func.func @transform_3(%arg0: i32) -> (i32, i32) {
    %c0_i32 = arith.constant 0 : i32
    %c0_i32_0 = arith.constant 0 : i32
    %c0_i32_1 = arith.constant 0 : i32
    return %c0_i32, %c0_i32_0 : i32, i32
  }
  func.func @transform_4(%arg0: i32) -> (i32, i32) {
    %c0_i32 = arith.constant 0 : i32
    %c0_i32_0 = arith.constant 0 : i32
    %c0_i32_1 = arith.constant 0 : i32
    return %c0_i32, %c0_i32_0 : i32, i32
  }
  func.func @transform_5(%arg0: i32) -> (i32, i32) {
    %c0_i32 = arith.constant 0 : i32
    %c0_i32_0 = arith.constant 0 : i32
    %c0_i32_1 = arith.constant 0 : i32
    return %c0_i32, %c0_i32_0 : i32, i32
  }
  func.func @transform_6(%arg0: i32) -> (i32, i32) {
    %c0_i32 = arith.constant 0 : i32
    %c0_i32_0 = arith.constant 0 : i32
    return %arg0, %c0_i32 : i32, i32
  }
  func.func @transform_7(%arg0: i32) -> (i32, i32) {
    %c0_i32 = arith.constant 0 : i32
    %c0_i32_0 = arith.constant 0 : i32
    return %arg0, %c0_i32 : i32, i32
  }
}

</mosaic_0001>

<llo_original>
// kernel: tpu_custom_call.1
$region0: #{tpu_custom_call.1}
  #allocation0 [shape = 'u32[]', space=smem, size = 0x4, offset = 0x4, fixed_abs, tag = 'smem constant byte address 0x4 - core index']
  #allocation1 [shape = 'u32[144,128]{1,0:T(1,128)}', space=vmem, size = 0x12000, scoped, tag = 'internal scratch']
  %s0 = inlined_call_operand.vmem [shape: bf16[8,48], index: 0, kind: input, shape index: {}]
  %s1 = inlined_call_operand.hbm [shape: f32[8,128], index: 1, kind: input, shape index: {}, may-alias: {1,7}]
  %s2 = inlined_call_operand.hbm [shape: bf16[48,512], index: 2, kind: input, shape index: {}]
  %s3 = inlined_call_operand.vmem [shape: f32[1,512], index: 3, kind: input, shape index: {}]
  %s4 = inlined_call_operand.hbm [shape: bf16[128,128], index: 4, kind: input, shape index: {}]
  %s5 = inlined_call_operand.vmem [shape: f32[1,128], index: 5, kind: input, shape index: {}]
  %s6 = inlined_call_operand.hbm [shape: f32[8,128], index: 6, kind: output, shape index: {0}]
  %s7 = inlined_call_operand.hbm [shape: f32[8,128], index: 7, kind: output, shape index: {1}, may-alias: {1,7}]
  %8 = xla_tuple %s6, %s7
  %s9 = sld [smem:[#allocation0]]
  $region54: #{tpu_custom_call.1} parent=0
    _
  %s11 = ssub.s32 1, %s9
  %s12 = scalar_select 0, %s11, %s9
  $region1: #{tpu_custom_call.1} parent=0
    #allocation2 [shape = 'u8[4096]{0}', space=vmem, size = 0x1000, scoped, tag = 'input window, operand 1, single buffered']
    #allocation3 [shape = 's32[1]{0}', space=sflag, size = 0x4, scoped, tag = 'scoped memory for tpu_custom_call.1']
    #allocation4 [shape = 's32[1]{0}', space=sflag, size = 0x4, scoped, tag = 'scoped memory for tpu_custom_call.1']
    #allocation5 [shape = 'u8[49152]{0}', space=vmem, size = 0xc000, scoped, tag = 'input window, operand 2, single buffered']
    #allocation6 [shape = 's32[1]{0}', space=sflag, size = 0x4, scoped, tag = 'scoped memory for tpu_custom_call.1']
    #allocation7 [shape = 'u8[32768]{0}', space=vmem, size = 0x8000, scoped, tag = 'input window, operand 4, single buffered']
    #allocation8 [shape = 'u8[4096]{0}', space=vmem, size = 0x1000, scoped, tag = 'output window, operand 0, single buffered']
    #allocation9 [shape = 'u8[4096]{0}', space=vmem, size = 0x1000, scoped, tag = 'output window, operand 1, single buffered']
    #allocation10 [shape = 's32[1]{0}', space=sflag, size = 0x4, scoped, tag = 'scoped memory for tpu_custom_call.1']
    %13 = vsyncpa [#allocation3], 0
    %14 = vsyncpa [#allocation6], 0
    %15 = vsyncpa [#allocation4], 0
    %16 = vsyncpa [#allocation10], 0
    // Predicated region
    $region2: #{tpu_custom_call.1} parent=1 // pred_check
      _
    $region3: #{tpu_custom_call.1} parent=1 // pred_check_branch
      %18 = sbr.rel (0) target = $region5
    $region4: #{tpu_custom_call.1} parent=1 // pred_region
      _
    $region5: #{tpu_custom_call.1} parent=1 // pred_fallthru
      _
    // Predicated region
    $region6: #{tpu_custom_call.1} parent=1 // pred_check
      _
    $region7: #{tpu_custom_call.1} parent=1 // pred_check_branch
      %20 = sbr.rel (0) target = $region9
    $region8: #{tpu_custom_call.1} parent=1 // pred_region
      %s22 = ssub.s32 128, 128
      %23 = vsyncadd [#allocation3], %s22
      %s25 = sshll.u32 [#allocation2], 4
      %s26 = int_to_ptr.vmem [resolvable:$true] %s25
      %28 = dma.hbm_to_vmem [thread:$0]  %s1, 128, %s26, [#allocation3]
    $region9: #{tpu_custom_call.1} parent=1 // pred_fallthru
      _
    // Predicated region
    $region10: #{tpu_custom_call.1} parent=1 // pred_check
      _
    $region11: #{tpu_custom_call.1} parent=1 // pred_check_branch
      %30 = sbr.rel (0) target = $region13
    $region12: #{tpu_custom_call.1} parent=1 // pred_region
      %s32 = ssub.s32 1536, 1536
      %33 = vsyncadd [#allocation6], %s32
      %s34 = sshll.u32 [#allocation5], 4
      %s35 = int_to_ptr.vmem [resolvable:$true] %s34
      %40 = dma.hbm_to_vmem [thread:$0]  %s2, 1536, %s35, [#allocation6], 256, 256, 16
    $region13: #{tpu_custom_call.1} parent=1 // pred_fallthru
      _
    // Predicated region
    $region14: #{tpu_custom_call.1} parent=1 // pred_check
      _
    $region15: #{tpu_custom_call.1} parent=1 // pred_check_branch
      %42 = sbr.rel (0) target = $region17
    $region16: #{tpu_custom_call.1} parent=1 // pred_region
      _
    $region17: #{tpu_custom_call.1} parent=1 // pred_fallthru
      _
    // Predicated region
    $region18: #{tpu_custom_call.1} parent=1 // pred_check
      _
    $region19: #{tpu_custom_call.1} parent=1 // pred_check_branch
      %44 = sbr.rel (0) target = $region21
    $region20: #{tpu_custom_call.1} parent=1 // pred_region
      %s46 = ssub.s32 1024, 1024
      %47 = vsyncadd [#allocation6], %s46
      %s48 = sshll.u32 [#allocation7], 4
      %s49 = int_to_ptr.vmem [resolvable:$true] %s48
      %54 = dma.hbm_to_vmem [thread:$0]  %s4, 1024, %s49, [#allocation6], 64, 64, 4
    $region21: #{tpu_custom_call.1} parent=1 // pred_fallthru
      _
    // Predicated region
    $region22: #{tpu_custom_call.1} parent=1 // pred_check
      _
    $region23: #{tpu_custom_call.1} parent=1 // pred_check_branch
      %56 = sbr.rel (0) target = $region25
    $region24: #{tpu_custom_call.1} parent=1 // pred_region
      _
    $region25: #{tpu_custom_call.1} parent=1 // pred_fallthru
      _
    // Predicated region
    $region26: #{tpu_custom_call.1} parent=1 // pred_check
      _
    $region27: #{tpu_custom_call.1} parent=1 // pred_check_branch
      %58 = sbr.rel (0) target = $region29
    $region28: #{tpu_custom_call.1} parent=1 // pred_region
      %59 = dma.done [#allocation3], 128
    $region29: #{tpu_custom_call.1} parent=1 // pred_fallthru
      _
    // Predicated region
    $region30: #{tpu_custom_call.1} parent=1 // pred_check
      _
    $region31: #{tpu_custom_call.1} parent=1 // pred_check_branch
      %61 = sbr.rel (0) target = $region33
    $region32: #{tpu_custom_call.1} parent=1 // pred_region
      %62 = dma.done [#allocation6], 1536
    $region33: #{tpu_custom_call.1} parent=1 // pred_fallthru
      _
    // Predicated region
    $region34: #{tpu_custom_call.1} parent=1 // pred_check
      _
    $region35: #{tpu_custom_call.1} parent=1 // pred_check_branch
      %64 = sbr.rel (0) target = $region37
    $region36: #{tpu_custom_call.1} parent=1 // pred_region
      %65 = dma.done [#allocation6], 1024
    $region37: #{tpu_custom_call.1} parent=1 // pred_fallthru
      _
    %v67 = vld [vmem:[#allocation2] sm:$0xff]
    %v68 = vld [vmem:[%s0] sm:$0xf]
    %v69 = vld [vmem:[#allocation5] sm:$0xff]
    %v70 = vld [vmem:[#allocation5 + $0x8] sm:$0xff]
    %v71 = vld [vmem:[#allocation5 + $0x10] sm:$0xff]
    %v72 = vld [vmem:[#allocation5 + $0x18] sm:$0xff]
    %v73 = vld [vmem:[#allocation5 + $0x20] sm:$0xff]
    %v74 = vld [vmem:[#allocation5 + $0x28] sm:$0xff]
    %v75 = vld [vmem:[#allocation5 + $0x30] sm:$0xff]
    %v76 = vld [vmem:[#allocation5 + $0x38] sm:$0xff]
    %v77 = vld [vmem:[#allocation5 + $0x40] sm:$0xff]
    %v78 = vld [vmem:[#allocation5 + $0x48] sm:$0xff]
    %v79 = vld [vmem:[#allocation5 + $0x50] sm:$0xff]
    %v80 = vld [vmem:[#allocation5 + $0x58] sm:$0xff]
    %v81 = vld [vmem:[%s3] sm:$0xf]
    %v83 = vlaneseq
    %v84 = vshrl.u32 %v83, 7
    %v85 = vsub.s32 0, %v84
    %v86 = vrot.slane %v81, %v85
    %v87 = vlaneseq
    %v88 = vshrl.u32 %v87, 7
    %v89 = vsub.s32 1, %v88
    %v90 = vrot.slane %v81, %v89
    %v91 = vlaneseq
    %v92 = vshrl.u32 %v91, 7
    %v93 = vsub.s32 2, %v92
    %v94 = vrot.slane %v81, %v93
    %v95 = vlaneseq
    %v96 = vshrl.u32 %v95, 7
    %v97 = vsub.s32 3, %v96
    %v98 = vrot.slane %v81, %v97
    %v115 = vunpack.c.l.b16 %v69
    %v116 = vunpack.c.h.b16 %v69
    %v117 = vunpack.c.l.b16 %v70
    %v118 = vunpack.c.h.b16 %v70
    %v119 = vunpack.c.l.b16 %v71
    %v120 = vunpack.c.h.b16 %v71
    %v121 = vunpack.c.l.b16 %v72
    %v122 = vunpack.c.h.b16 %v72
    %v123 = vunpack.c.l.b16 %v73
    %v124 = vunpack.c.h.b16 %v73
    %v125 = vunpack.c.l.b16 %v74
    %v126 = vunpack.c.h.b16 %v74
    %v127 = vunpack.c.l.b16 %v75
    %v128 = vunpack.c.h.b16 %v75
    %v129 = vunpack.c.l.b16 %v76
    %v130 = vunpack.c.h.b16 %v76
    %v131 = vunpack.c.l.b16 %v77
    %v132 = vunpack.c.h.b16 %v77
    %v133 = vunpack.c.l.b16 %v78
    %v134 = vunpack.c.h.b16 %v78
    %v135 = vunpack.c.l.b16 %v79
    %v136 = vunpack.c.h.b16 %v79
    %v137 = vunpack.c.l.b16 %v80
    %v138 = vunpack.c.h.b16 %v80
    %v139 = vpack.c.b16 %v119, %v115
    %v140 = vpack.c.b16 %v120, %v116
    %v141 = vpack.c.b16 %v121, %v117
    %v142 = vpack.c.b16 %v122, %v118
    %v143 = vpack.c.b16 %v127, %v123
    %v144 = vpack.c.b16 %v128, %v124
    %v145 = vpack.c.b16 %v129, %v125
    %v146 = vpack.c.b16 %v130, %v126
    %v147 = vpack.c.b16 %v135, %v131
    %v148 = vpack.c.b16 %v136, %v132
    %v149 = vpack.c.b16 %v137, %v133
    %v150 = vpack.c.b16 %v138, %v134
    %vm163 = vcmask 392192
    %v165 = vsel %vm163, %v68, 0
    %167 = vmatprep.subr.bf16.mxu0 %v140
    %168 = vmatpush1.bf16.msra.mxu0 %v139
    %169 = vmatprep.subr.bf16.mxu0 %v144
    %170 = vmatpush1.bf16.msra.mxu0 %v143
    %171 = vmatprep.subr.bf16.mxu0 %v148
    %172 = vmatpush1.bf16.msra.mxu0 %v147
    %173 = vmatprep.subr.bf16.mxu0 0
    %174 = vmatpush1.bf16.msra.mxu0 0
    %175 = vmatprep.subr.bf16.mxu0 0
    %176 = vmatpush1.bf16.msra.mxu0 0
    %177 = vmatprep.subr.bf16.mxu0 0
    %178 = vmatpush1.bf16.msra.mxu0 0
    %179 = vmatprep.subr.bf16.mxu0 0
    %180 = vmatpush1.bf16.msra.mxu0 0
    %181 = vmatprep.subr.bf16.mxu0 0
    %182 = vmatpush1.bf16.msra.mxu0 0
    %183 = vmatprep.subr.bf16.mxu0 0
    %184 = vmatpush1.bf16.msra.mxu0 0
    %185 = vmatprep.subr.bf16.mxu0 0
    %186 = vmatpush1.bf16.msra.mxu0 0
    %187 = vmatprep.subr.bf16.mxu0 0
    %188 = vmatpush1.bf16.msra.mxu0 0
    %189 = vmatprep.subr.bf16.mxu0 0
    %190 = vmatpush1.bf16.msra.mxu0 0
    %191 = vmatprep.subr.bf16.mxu0 0
    %192 = vmatpush1.bf16.msra.mxu0 0
    %193 = vmatprep.subr.bf16.mxu0 0
    %194 = vmatpush1.bf16.msra.mxu0 0
    %195 = vmatprep.subr.bf16.mxu0 0
    %196 = vmatpush1.bf16.msra.mxu0 0
    %197 = vmatprep.subr.bf16.mxu0 0
    %198 = vmatpush1.bf16.msra.mxu0 0
    %199 = vmatprep.mubr.bf16.mxu0 0
    %200 = vmatmul.mubr.bf16.gmra.mrb[0].mxu0 %v165
    %v201 = vpop.f32.mrb[0].mxu0
    %v202 = vadd.f32 %v86, %v201
    %v203 = vpop.f32.mrb[0].mxu0
    %v204 = vadd.f32 %v90, %v203
    %v205 = vpop.f32.mrb[0].mxu0
    %v206 = vpop.f32.mrb[0].mxu0
    %207 = vdwg.mxu0
    %208 = vmatprep.subr.bf16.mxu0 %v142
    %209 = vmatpush1.bf16.msra.mxu0 %v141
    %210 = vmatprep.subr.bf16.mxu0 %v146
    %211 = vmatpush1.bf16.msra.mxu0 %v145
    %212 = vmatprep.subr.bf16.mxu0 %v150
    %213 = vmatpush1.bf16.msra.mxu0 %v149
    %214 = vmatprep.subr.bf16.mxu0 0
    %215 = vmatpush1.bf16.msra.mxu0 0
    %216 = vmatprep.subr.bf16.mxu0 0
    %217 = vmatpush1.bf16.msra.mxu0 0
    %218 = vmatprep.subr.bf16.mxu0 0
    %219 = vmatpush1.bf16.msra.mxu0 0
    %220 = vmatprep.subr.bf16.mxu0 0
    %221 = vmatpush1.bf16.msra.mxu0 0
    %222 = vmatprep.subr.bf16.mxu0 0
    %223 = vmatpush1.bf16.msra.mxu0 0
    %224 = vmatprep.subr.bf16.mxu0 0
    %225 = vmatpush1.bf16.msra.mxu0 0
    %226 = vmatprep.subr.bf16.mxu0 0
    %227 = vmatpush1.bf16.msra.mxu0 0
    %228 = vmatprep.subr.bf16.mxu0 0
    %229 = vmatpush1.bf16.msra.mxu0 0
    %230 = vmatprep.subr.bf16.mxu0 0
    %231 = vmatpush1.bf16.msra.mxu0 0
    %232 = vmatprep.subr.bf16.mxu0 0
    %233 = vmatpush1.bf16.msra.mxu0 0
    %234 = vmatprep.subr.bf16.mxu0 0
    %235 = vmatpush1.bf16.msra.mxu0 0
    %236 = vmatprep.subr.bf16.mxu0 0
    %237 = vmatpush1.bf16.msra.mxu0 0
    %238 = vmatprep.subr.bf16.mxu0 0
    %239 = vmatpush1.bf16.msra.mxu0 0
    %240 = vmatprep.mubr.bf16.mxu0 0
    %241 = vmatmul.mubr.bf16.gmra.mrb[0].mxu0 %v165
    %v242 = vpop.f32.mrb[0].mxu0
    %v243 = vadd.f32 %v94, %v242
    %v244 = vpop.f32.mrb[0].mxu0
    %v245 = vadd.f32 %v98, %v244
    %v246 = vpop.f32.mrb[0].mxu0
    %v247 = vpop.f32.mrb[0].mxu0
    %248 = vdwg.mxu0
    %v249 = vxor.u32 %v202, 2147483648
    %v250 = vmul.f32 %v249, 1.442695
    %v251 = vpow.pop %v250
    %v252 = vadd.f32 %v251, 1.0
    %v253 = vrcp.pop %v252
    %v254 = vmul.f32 1.0, %v253
    %v255 = vxor.u32 %v204, 2147483648
    %v256 = vmul.f32 %v255, 1.442695
    %v257 = vpow.pop %v256
    %v258 = vadd.f32 %v257, 1.0
    %v259 = vrcp.pop %v258
    %v260 = vmul.f32 1.0, %v259
    %v261 = vmul.f32 %v254, %v245
    %v262 = vadd.f32 %v243, %v261
    %v263 = vtanh.pop %v262
    %v264 = vsub.f32 1.0, %v260
    %v265 = vmul.f32 %v264, %v263
    %v266 = vmul.f32 %v260, %v67
    %v267 = vadd.f32 %v265, %v266
    %268 = vst [vmem:[#allocation9] sm:$0xff] %v267
    %v269 = vpack.c.bf16 %v267, %v267
    %v270 = vld [vmem:[#allocation7] sm:$0xf]
    %v271 = vld [vmem:[#allocation7 + $0x4] sm:$0xf]
    %v272 = vld [vmem:[#allocation7 + $0x8] sm:$0xf]
    %v273 = vld [vmem:[#allocation7 + $0xc] sm:$0xf]
    %v274 = vld [vmem:[#allocation7 + $0x10] sm:$0xf]
    %v275 = vld [vmem:[#allocation7 + $0x14] sm:$0xf]
    %v276 = vld [vmem:[#allocation7 + $0x18] sm:$0xf]
    %v277 = vld [vmem:[#allocation7 + $0x1c] sm:$0xf]
    %v278 = vld [vmem:[#allocation7 + $0x20] sm:$0xf]
    %v279 = vld [vmem:[#allocation7 + $0x24] sm:$0xf]
    %v280 = vld [vmem:[#allocation7 + $0x28] sm:$0xf]
    %v281 = vld [vmem:[#allocation7 + $0x2c] sm:$0xf]
    %v282 = vld [vmem:[#allocation7 + $0x30] sm:$0xf]
    %v283 = vld [vmem:[#allocation7 + $0x34] sm:$0xf]
    %v284 = vld [vmem:[#allocation7 + $0x38] sm:$0xf]
    %v285 = vld [vmem:[#allocation7 + $0x3c] sm:$0xf]
    %v286 = vld [vmem:[%s5] sm:$0x1]
    %v288 = vlaneseq
    %v289 = vshrl.u32 %v288, 7
    %v290 = vsub.s32 0, %v289
    %v291 = vrot.slane %v286, %v290
    %v309 = vunpack.c.l.b16 %v270
    %v310 = vunpack.c.l.b16 %v271
    %v311 = vunpack.c.l.b16 %v272
    %v312 = vunpack.c.l.b16 %v273
    %v313 = vunpack.c.l.b16 %v274
    %v314 = vunpack.c.l.b16 %v275
    %v315 = vunpack.c.l.b16 %v276
    %v316 = vunpack.c.l.b16 %v277
    %v317 = vunpack.c.l.b16 %v278
    %v318 = vunpack.c.l.b16 %v279
    %v319 = vunpack.c.l.b16 %v280
    %v320 = vunpack.c.l.b16 %v281
    %v321 = vunpack.c.l.b16 %v282
    %v322 = vunpack.c.l.b16 %v283
    %v323 = vunpack.c.l.b16 %v284
    %v324 = vunpack.c.l.b16 %v285
    %v325 = vpack.c.b16 %v310, %v309
    %v326 = vpack.c.b16 %v312, %v311
    %v327 = vpack.c.b16 %v314, %v313
    %v328 = vpack.c.b16 %v316, %v315
    %v329 = vpack.c.b16 %v318, %v317
    %v330 = vpack.c.b16 %v320, %v319
    %v331 = vpack.c.b16 %v322, %v321
    %v332 = vpack.c.b16 %v324, %v323
    %341 = vmatprep.subr.bf16.mxu0 0
    %342 = vmatpush1.bf16.msra.mxu0 %v325
    %343 = vmatprep.subr.bf16.mxu0 0
    %344 = vmatpush1.bf16.msra.mxu0 %v326
    %345 = vmatprep.subr.bf16.mxu0 0
    %346 = vmatpush1.bf16.msra.mxu0 %v327
    %347 = vmatprep.subr.bf16.mxu0 0
    %348 = vmatpush1.bf16.msra.mxu0 %v328
    %349 = vmatprep.subr.bf16.mxu0 0
    %350 = vmatpush1.bf16.msra.mxu0 %v329
    %351 = vmatprep.subr.bf16.mxu0 0
    %352 = vmatpush1.bf16.msra.mxu0 %v330
    %353 = vmatprep.subr.bf16.mxu0 0
    %354 = vmatpush1.bf16.msra.mxu0 %v331
    %355 = vmatprep.subr.bf16.mxu0 0
    %356 = vmatpush1.bf16.msra.mxu0 %v332
    %357 = vmatprep.subr.bf16.mxu0 0
    %358 = vmatpush1.bf16.msra.mxu0 0
    %359 = vmatprep.subr.bf16.mxu0 0
    %360 = vmatpush1.bf16.msra.mxu0 0
    %361 = vmatprep.subr.bf16.mxu0 0
    %362 = vmatpush1.bf16.msra.mxu0 0
    %363 = vmatprep.subr.bf16.mxu0 0
    %364 = vmatpush1.bf16.msra.mxu0 0
    %365 = vmatprep.subr.bf16.mxu0 0
    %366 = vmatpush1.bf16.msra.mxu0 0
    %367 = vmatprep.subr.bf16.mxu0 0
    %368 = vmatpush1.bf16.msra.mxu0 0
    %369 = vmatprep.subr.bf16.mxu0 0
    %370 = vmatpush1.bf16.msra.mxu0 0
    %371 = vmatprep.subr.bf16.mxu0 0
    %372 = vmatpush1.bf16.msra.mxu0 0
    %373 = vmatprep.mubr.bf16.mxu0 0
    %374 = vmatmul.mubr.bf16.gmra.mrb[0].mxu0 %v269
    %v375 = vpop.f32.mrb[0].mxu0
    %v376 = vadd.f32 %v291, %v375
    %v377 = vpop.f32.mrb[0].mxu0
    %v378 = vpop.f32.mrb[0].mxu0
    %v379 = vpop.f32.mrb[0].mxu0
    %380 = vdwg.mxu0
    %v381 = vmul.f32 %v376, %v376
    %382 = vadd.xlane.f32.xlu0 %v381
    %v383 = vpop.xlane.xlu0 %382
    %v384 = vmax.f32 %v383, 1e-24
    %v385 = vrsqrt.pop %v384
    %v386 = vmul.f32 %v376, %v385
    %387 = vst [vmem:[#allocation8] sm:$0xff] %v386
    // Predicated region
    $region38: #{tpu_custom_call.1} parent=1 // pred_check
      _
    $region39: #{tpu_custom_call.1} parent=1 // pred_check_branch
      %389 = sbr.rel (0) target = $region41
    $region40: #{tpu_custom_call.1} parent=1 // pred_region
      %s391 = ssub.s32 128, 128
      %392 = vsyncadd [#allocation4], %s391
      %s394 = sshll.u32 [#allocation8], 4
      %s395 = int_to_ptr.vmem [resolvable:$true] %s394
      %397 = dma.vmem_to_hbm [thread:$0]  %s395, 128, %s6, [#allocation4]
    $region41: #{tpu_custom_call.1} parent=1 // pred_fallthru
      _
    // Predicated region
    $region42: #{tpu_custom_call.1} parent=1 // pred_check
      _
    $region43: #{tpu_custom_call.1} parent=1 // pred_check_branch
      %399 = sbr.rel (0) target = $region45
    $region44: #{tpu_custom_call.1} parent=1 // pred_region
      %s401 = ssub.s32 128, 128
      %402 = vsyncadd [#allocation10], %s401
      %s404 = sshll.u32 [#allocation9], 4
      %s405 = int_to_ptr.vmem [resolvable:$true] %s404
      %407 = dma.vmem_to_hbm [thread:$0]  %s405, 128, %s7, [#allocation10]
    $region45: #{tpu_custom_call.1} parent=1 // pred_fallthru
      _
    // Predicated region
    $region46: #{tpu_custom_call.1} parent=1 // pred_check
      _
    $region47: #{tpu_custom_call.1} parent=1 // pred_check_branch
      %409 = sbr.rel (0) target = $region49
    $region48: #{tpu_custom_call.1} parent=1 // pred_region
      %410 = dma.done [#allocation4], 128
    $region49: #{tpu_custom_call.1} parent=1 // pred_fallthru
      _
    // Predicated region
    $region50: #{tpu_custom_call.1} parent=1 // pred_check
      _
    $region51: #{tpu_custom_call.1} parent=1 // pred_check_branch
      %412 = sbr.rel (0) target = $region53
    $region52: #{tpu_custom_call.1} parent=1 // pred_region
      %413 = dma.done [#allocation10], 128
    $region53: #{tpu_custom_call.1} parent=1 // pred_fallthru
      _
    %414 = vsyncpa [#allocation3], 1
    %415 = vsyncpa [#allocation6], 1
    %416 = vsyncpa [#allocation4], 1
    %417 = vsyncpa [#allocation10], 1

</llo_original>
